<compile_context>
chip_gen: v5e
topology: v5e:2x2
jax: 0.10.0
libtpu: 0.0.40
codegen_flags: <defaults>
</compile_context>

<pallas_src>
import functools

import jax
import jax.numpy as jnp
from jax import lax
from jax.experimental import pallas as pl
from jax.experimental.pallas import tpu as pltpu


# --------------------------- QKV projection kernel ---------------------------
def _qkv_proj_kernel(x_ref, wq_ref, bq_ref, wk_ref, bk_ref, wv_ref, bv_ref,
                     q_ref, k_ref, v_ref):
    """1x1 convs as matmuls over one (C, TN) spatial tile; biases folded in."""
    x = x_ref[0]                                                    # (C, TN) bf16
    q = jnp.dot(wq_ref[...], x, preferred_element_type=jnp.float32) + bq_ref[...]
    k = jnp.dot(wk_ref[...], x, preferred_element_type=jnp.float32) + bk_ref[...]
    v = jnp.dot(wv_ref[...], x, preferred_element_type=jnp.float32) + bv_ref[...]
    q_ref[0] = q.astype(q_ref.dtype)
    k_ref[0] = k.astype(k_ref.dtype)
    v_ref[0] = v.astype(v_ref.dtype)


# --------------------------- flash attention kernel --------------------------
def _flash_attn_kernel(q_ref, k_ref, v_ref, xres_ref, gamma_ref, o_ref,
                       m_scr, l_scr, acc_scr, *, n_valid, block_k, mask_keys):
    ki = pl.program_id(2)
    nk = pl.num_programs(2)

    @pl.when(ki == 0)
    def _init():
        m_scr[...] = jnp.full_like(m_scr, -jnp.inf)

    q = q_ref[0]                                                    # (Ck, TQ) bf16
    k = k_ref[0]                                                    # (Ck, TK) bf16
    v = v_ref[0]                                                    # (C,  TK) bf16

    # energy^T tile: s[j, i] = <k_j, q_i>; contract the channel (sublane) dim
    # of both operands — no transpose materialized.
    s = lax.dot_general(k, q, (((0,), (0,)), ((), ())),
                        preferred_element_type=jnp.float32)         # (TK, TQ) f32

    if mask_keys:  # static: only emitted when N was padded
        key_idx = ki * block_k + lax.broadcasted_iota(jnp.int32, s.shape, 0)
        s = jnp.where(key_idx < n_valid, s, -jnp.inf)

    # ---- online softmax over the key axis (axis 0), stats in f32, (1, TQ)
    m_prev = m_scr[...]
    m_new = jnp.maximum(m_prev, jnp.max(s, axis=0, keepdims=True))
    p = jnp.exp(s - m_new)                                          # (TK, TQ) f32
    p_sum = jnp.sum(p, axis=0, keepdims=True)                       # (1, TQ)
    pv = jnp.dot(v, p.astype(jnp.bfloat16),
                 preferred_element_type=jnp.float32)                # (C, TQ) f32
    m_scr[...] = m_new

    @pl.when(ki == 0)
    def _first():   # no rescale needed on the first key tile
        l_scr[...] = p_sum
        acc_scr[...] = pv

    @pl.when(ki != 0)
    def _rescale():
        alpha = jnp.exp(m_prev - m_new)
        l_scr[...] = alpha * l_scr[...] + p_sum
        acc_scr[...] = alpha * acc_scr[...] + pv

    # ---- finalize: normalize, residual (f32 x), lane-dense store
    @pl.when(ki == nk - 1)
    def _finish():
        inv_l = pl.reciprocal(l_scr[...], approx=True)              # (1, TQ)
        attn_out = acc_scr[...] * inv_l                             # (C, TQ) f32
        o_ref[0] = (gamma_ref[0] * attn_out + xres_ref[0]).astype(o_ref.dtype)


# ------------------------------ wrapper --------------------------------------
def self_attention_pallas(x_nchw, wq, bq, wk, bk, wv, bv, gamma, *, tile=256):
    """x_nchw: (B, C, H, W) f32. Weights already spectral-normalized, in
    PyTorch (C_out, C_in) layout; biases (C_out, 1); gamma (1,).
    tile: spatial (lane) tile; 256 for v6e/v7x, 128 recommended on v5e."""
    B, C, H, W = x_nchw.shape
    N = H * W
    Ck = wq.shape[0]

    # Lane tile over the spatial axis: multiple of 128; pad N up to tile grid.
    tn = min(tile, pl.cdiv(N, 128) * 128)
    n_pad = pl.cdiv(N, tn) * tn
    nt = n_pad // tn

    # NCHW -> (B, C, N): pure reshape; zero-pad padded spatial columns.
    x_bcn = x_nchw.reshape(B, C, N)
    if n_pad != N:
        x_bcn = jnp.pad(x_bcn, ((0, 0), (0, 0), (0, n_pad - N)))
    x_bf = x_bcn.astype(jnp.bfloat16)          # bf16 stream for projections
    # x_bcn (f32) is kept only for the residual add in the flash kernel.

    wq_b = wq.astype(jnp.bfloat16)
    wk_b = wk.astype(jnp.bfloat16)
    wv_b = wv.astype(jnp.bfloat16)

    # ---------------- stage 1: Q/K/V projections (once per spatial tile) -----
    const_p = lambda r, c: pl.BlockSpec((r, c), lambda b, ni: (0, 0))
    q_bf, k_bf, v_bf = pl.pallas_call(
        _qkv_proj_kernel,
        out_shape=(jax.ShapeDtypeStruct((B, Ck, n_pad), jnp.bfloat16),
                   jax.ShapeDtypeStruct((B, Ck, n_pad), jnp.bfloat16),
                   jax.ShapeDtypeStruct((B, C, n_pad), jnp.bfloat16)),
        grid=(B, nt),
        in_specs=[
            pl.BlockSpec((1, C, tn), lambda b, ni: (b, 0, ni)),      # x (bf16)
            const_p(Ck, C), const_p(Ck, 1),                          # Wq, bq
            const_p(Ck, C), const_p(Ck, 1),                          # Wk, bk
            const_p(C, C), const_p(C, 1),                            # Wv, bv
        ],
        out_specs=[
            pl.BlockSpec((1, Ck, tn), lambda b, ni: (b, 0, ni)),     # Q
            pl.BlockSpec((1, Ck, tn), lambda b, ni: (b, 0, ni)),     # K
            pl.BlockSpec((1, C, tn), lambda b, ni: (b, 0, ni)),      # V
        ],
        compiler_params=pltpu.CompilerParams(
            dimension_semantics=("parallel", "parallel")),
    )(x_bf, wq_b, bq, wk_b, bk, wv_b, bv)

    # ---------------- stage 2: flash attention + gamma*out + residual --------
    flash = functools.partial(_flash_attn_kernel,
                              n_valid=N, block_k=tn, mask_keys=(n_pad != N))
    out_bcn = pl.pallas_call(
        flash,
        out_shape=jax.ShapeDtypeStruct((B, C, n_pad), x_nchw.dtype),
        grid=(B, nt, nt),
        in_specs=[
            pl.BlockSpec((1, Ck, tn), lambda b, qi, ki: (b, 0, qi)),  # Q tile
            pl.BlockSpec((1, Ck, tn), lambda b, qi, ki: (b, 0, ki)),  # K tile
            pl.BlockSpec((1, C, tn), lambda b, qi, ki: (b, 0, ki)),   # V tile
            pl.BlockSpec((1, C, tn), lambda b, qi, ki: (b, 0, qi)),   # residual x (f32)
            pl.BlockSpec(memory_space=pltpu.MemorySpace.SMEM),        # gamma scalar
        ],
        out_specs=pl.BlockSpec((1, C, tn), lambda b, qi, ki: (b, 0, qi)),
        scratch_shapes=[
            pltpu.VMEM((1, tn), jnp.float32),    # running max
            pltpu.VMEM((1, tn), jnp.float32),    # running sum
            pltpu.VMEM((C, tn), jnp.float32),    # output accumulator
        ],
        compiler_params=pltpu.CompilerParams(
            dimension_semantics=("parallel", "parallel", "arbitrary")),
    )(q_bf, k_bf, v_bf, x_bcn, gamma)

    if n_pad != N:
        out_bcn = out_bcn[:, :, :N]
    return out_bcn.reshape(B, C, H, W)


# ------------------------- parameter construction ----------------------------
def spectral_normalize(w_oi):
    """Divide the (C_out, C_in) weight matrix by its largest singular value.
    (PyTorch's spectral_norm approximates this with power iteration.)"""
    sigma = jnp.linalg.svd(w_oi, compute_uv=False)[0]
    return w_oi / sigma


def make_params(key, in_dim):
    ck = in_dim // 8
    ks = jax.random.split(key, 6)
    wq = spectral_normalize(jax.random.normal(ks[0], (ck, in_dim), jnp.float32) * 0.2)
    wk = spectral_normalize(jax.random.normal(ks[1], (ck, in_dim), jnp.float32) * 0.2)
    wv = spectral_normalize(jax.random.normal(ks[2], (in_dim, in_dim), jnp.float32) * 0.2)
    bq = jax.random.normal(ks[3], (ck, 1), jnp.float32) * 0.05
    bk = jax.random.normal(ks[4], (ck, 1), jnp.float32) * 0.05
    bv = jax.random.normal(ks[5], (in_dim, 1), jnp.float32) * 0.05
    gamma = jnp.zeros((1,), jnp.float32)      # nn.Parameter(torch.zeros(1))
    return wq, bq, wk, bk, wv, bv, gamma


# ------------------------------ reference ------------------------------------
def self_attention_ref(x_nchw, wq, bq, wk, bk, wv, bv, gamma):
    B, C, H, W = x_nchw.shape
    N = H * W
    x = x_nchw.reshape(B, C, N)                          # (B, C, N)
    q = jnp.einsum("oc,bcn->bon", wq, x) + bq            # (B, Ck, N)
    k = jnp.einsum("oc,bcn->bon", wk, x) + bk            # (B, Ck, N)
    v = jnp.einsum("oc,bcn->bon", wv, x) + bv            # (B, C, N)
    energy = jnp.einsum("bci,bcj->bij", q, k)            # energy[i, j] = q_i . k_j
    attn = jax.nn.softmax(energy, axis=-1)
    out = jnp.einsum("bcj,bij->bci", v, attn)            # bmm(value, attn^T)
    out = gamma[0] * out + x
    return out.reshape(B, C, H, W)


# -------------------------------- main ----------------------------------------
if __name__ == "__main__":
    key = jax.random.PRNGKey(0)
    kx, kp, kx2 = jax.random.split(key, 3)

    # Main check: in_dim=16 -> query/key channels = 2; N = 256 (no padding).
    B, C, H, W = 2, 16, 16, 16
    x = jax.random.normal(kx, (B, C, H, W), jnp.float32)
    wq, bq, wk, bk, wv, bv, gamma = make_params(kp, C)
    gamma = jnp.full((1,), 0.5, jnp.float32)   # nonzero so attention contributes

    out = jax.block_until_ready(self_attention_pallas(x, wq, bq, wk, bk, wv, bv, gamma))
    ref = self_attention_ref(x, wq, bq, wk, bk, wv, bv, gamma)
    assert out.shape == (B, C, H, W)
    # bf16 matmul operands with f32 accumulation -> slightly looser tolerance
    assert jnp.allclose(out, ref, atol=2e-2, rtol=2e-2), \
        float(jnp.max(jnp.abs(out - ref)))

    # Secondary check: non-128-multiple spatial extent exercises the padded-N
    # + masked-key path (N = 100 -> padded to 128).
    H2 = W2 = 10
    x2 = jax.random.normal(kx2, (B, C, H2, W2), jnp.float32)
    out2 = jax.block_until_ready(self_attention_pallas(x2, wq, bq, wk, bk, wv, bv, gamma))
    ref2 = self_attention_ref(x2, wq, bq, wk, bk, wv, bv, gamma)
    assert out2.shape == (B, C, H2, W2)
    assert jnp.allclose(out2, ref2, atol=2e-2, rtol=2e-2), \
        float(jnp.max(jnp.abs(out2 - ref2)))

    print("KERNEL_OK")
</pallas_src>

<mosaic_0001>
module attributes {stable_mosaic.version = 11 : i64} {
  func.func @_qkv_proj_kernel(%arg0: i32, %arg1: i32, %arg2: memref<1x16x256xbf16, #tpu.memory_space<vmem>>, %arg3: memref<2x16xbf16, #tpu.memory_space<vmem>>, %arg4: memref<2x1xf32, #tpu.memory_space<vmem>>, %arg5: memref<2x16xbf16, #tpu.memory_space<vmem>>, %arg6: memref<2x1xf32, #tpu.memory_space<vmem>>, %arg7: memref<16x16xbf16, #tpu.memory_space<vmem>>, %arg8: memref<16x1xf32, #tpu.memory_space<vmem>>, %arg9: memref<1x2x256xbf16, #tpu.memory_space<vmem>>, %arg10: memref<1x2x256xbf16, #tpu.memory_space<vmem>>, %arg11: memref<1x16x256xbf16, #tpu.memory_space<vmem>>) attributes {dimension_semantics = [#tpu.dimension_semantics<parallel>, #tpu.dimension_semantics<parallel>], iteration_bounds = array<i64: 2, 1>, scalar_prefetch = 0 : i64, scratch_operands = 0 : i64, tpu.core_type = #tpu.core_type<tc>, window_params = [{transform_indices = @transform_0, window_bounds = array<i64: 1, 16, 256>}, {pipeline_mode = #tpu.pipeline_mode<synchronous>, transform_indices = @transform_1, window_bounds = array<i64: 2, 16>}, {pipeline_mode = #tpu.pipeline_mode<synchronous>, transform_indices = @transform_2, window_bounds = array<i64: 2, 1>}, {pipeline_mode = #tpu.pipeline_mode<synchronous>, transform_indices = @transform_3, window_bounds = array<i64: 2, 16>}, {pipeline_mode = #tpu.pipeline_mode<synchronous>, transform_indices = @transform_4, window_bounds = array<i64: 2, 1>}, {pipeline_mode = #tpu.pipeline_mode<synchronous>, transform_indices = @transform_5, window_bounds = array<i64: 16, 16>}, {pipeline_mode = #tpu.pipeline_mode<synchronous>, transform_indices = @transform_6, window_bounds = array<i64: 16, 1>}, {transform_indices = @transform_7, window_bounds = array<i64: 1, 2, 256>}, {transform_indices = @transform_8, window_bounds = array<i64: 1, 2, 256>}, {transform_indices = @transform_9, window_bounds = array<i64: 1, 16, 256>}]} {
    %c0 = arith.constant 0 : index
    %c0_0 = arith.constant 0 : index
    %c0_1 = arith.constant 0 : index
    %0 = vector.load %arg2[%c0, %c0_0, %c0_1] : memref<1x16x256xbf16, #tpu.memory_space<vmem>>, vector<1x16x256xbf16>
    %1 = vector.shape_cast %0 : vector<1x16x256xbf16> to vector<16x256xbf16>
    %c0_2 = arith.constant 0 : index
    %c0_3 = arith.constant 0 : index
    %2 = vector.load %arg3[%c0_2, %c0_3] : memref<2x16xbf16, #tpu.memory_space<vmem>>, vector<2x16xbf16>
    %cst = arith.constant dense<0.000000e+00> : vector<2x256xf32>
    %3 = tpu.matmul %2, %1, %cst {dimension_numbers = #tpu.dot_dimension_numbers<[1], [0], [0], [1], [0, 0, 1, 1], [], []>} : vector<2x16xbf16>, vector<16x256xbf16>, vector<2x256xf32> -> vector<2x256xf32>
    %c0_4 = arith.constant 0 : index
    %c0_5 = arith.constant 0 : index
    %4 = vector.load %arg4[%c0_4, %c0_5] : memref<2x1xf32, #tpu.memory_space<vmem>>, vector<2x1xf32>
    %5 = vector.broadcast %4 : vector<2x1xf32> to vector<2x256xf32>
    %6 = arith.addf %3, %5 : vector<2x256xf32>
    %c0_6 = arith.constant 0 : index
    %c0_7 = arith.constant 0 : index
    %7 = vector.load %arg5[%c0_6, %c0_7] : memref<2x16xbf16, #tpu.memory_space<vmem>>, vector<2x16xbf16>
    %cst_8 = arith.constant dense<0.000000e+00> : vector<2x256xf32>
    %8 = tpu.matmul %7, %1, %cst_8 {dimension_numbers = #tpu.dot_dimension_numbers<[1], [0], [0], [1], [0, 0, 1, 1], [], []>} : vector<2x16xbf16>, vector<16x256xbf16>, vector<2x256xf32> -> vector<2x256xf32>
    %c0_9 = arith.constant 0 : index
    %c0_10 = arith.constant 0 : index
    %9 = vector.load %arg6[%c0_9, %c0_10] : memref<2x1xf32, #tpu.memory_space<vmem>>, vector<2x1xf32>
    %10 = vector.broadcast %9 : vector<2x1xf32> to vector<2x256xf32>
    %11 = arith.addf %8, %10 : vector<2x256xf32>
    %c0_11 = arith.constant 0 : index
    %c0_12 = arith.constant 0 : index
    %12 = vector.load %arg7[%c0_11, %c0_12] : memref<16x16xbf16, #tpu.memory_space<vmem>>, vector<16x16xbf16>
    %cst_13 = arith.constant dense<0.000000e+00> : vector<16x256xf32>
    %13 = tpu.matmul %12, %1, %cst_13 {dimension_numbers = #tpu.dot_dimension_numbers<[1], [0], [0], [1], [0, 0, 1, 1], [], []>} : vector<16x16xbf16>, vector<16x256xbf16>, vector<16x256xf32> -> vector<16x256xf32>
    %c0_14 = arith.constant 0 : index
    %c0_15 = arith.constant 0 : index
    %14 = vector.load %arg8[%c0_14, %c0_15] : memref<16x1xf32, #tpu.memory_space<vmem>>, vector<16x1xf32>
    %15 = vector.broadcast %14 : vector<16x1xf32> to vector<16x256xf32>
    %16 = arith.addf %13, %15 : vector<16x256xf32>
    %17 = arith.truncf %6 : vector<2x256xf32> to vector<2x256xbf16>
    %c0_16 = arith.constant 0 : index
    %c0_17 = arith.constant 0 : index
    %c0_18 = arith.constant 0 : index
    %18 = vector.load %arg9[%c0_16, %c0_17, %c0_18] : memref<1x2x256xbf16, #tpu.memory_space<vmem>>, vector<1x2x256xbf16>
    %19 = vector.shape_cast %18 : vector<1x2x256xbf16> to vector<2x256xbf16>
    %20 = vector.shape_cast %17 : vector<2x256xbf16> to vector<1x2x256xbf16>
    tpu.vector_store %arg9[%c0_16, %c0_17, %c0_18], %20 {strides = array<i32>} : memref<1x2x256xbf16, #tpu.memory_space<vmem>>, vector<1x2x256xbf16>,
    %21 = arith.truncf %11 : vector<2x256xf32> to vector<2x256xbf16>
    %c0_19 = arith.constant 0 : index
    %c0_20 = arith.constant 0 : index
    %c0_21 = arith.constant 0 : index
    %22 = vector.load %arg10[%c0_19, %c0_20, %c0_21] : memref<1x2x256xbf16, #tpu.memory_space<vmem>>, vector<1x2x256xbf16>
    %23 = vector.shape_cast %22 : vector<1x2x256xbf16> to vector<2x256xbf16>
    %24 = vector.shape_cast %21 : vector<2x256xbf16> to vector<1x2x256xbf16>
    tpu.vector_store %arg10[%c0_19, %c0_20, %c0_21], %24 {strides = array<i32>} : memref<1x2x256xbf16, #tpu.memory_space<vmem>>, vector<1x2x256xbf16>,
    %25 = arith.truncf %16 : vector<16x256xf32> to vector<16x256xbf16>
    %c0_22 = arith.constant 0 : index
    %c0_23 = arith.constant 0 : index
    %c0_24 = arith.constant 0 : index
    %26 = vector.load %arg11[%c0_22, %c0_23, %c0_24] : memref<1x16x256xbf16, #tpu.memory_space<vmem>>, vector<1x16x256xbf16>
    %27 = vector.shape_cast %26 : vector<1x16x256xbf16> to vector<16x256xbf16>
    %28 = vector.shape_cast %25 : vector<16x256xbf16> to vector<1x16x256xbf16>
    tpu.vector_store %arg11[%c0_22, %c0_23, %c0_24], %28 {strides = array<i32>} : memref<1x16x256xbf16, #tpu.memory_space<vmem>>, vector<1x16x256xbf16>,
    return
  }
  func.func @transform_0(%arg0: i32, %arg1: i32) -> (i32, i32, i32) {
    %c0_i32 = arith.constant 0 : i32
    %c0_i32_0 = arith.constant 0 : i32
    return %arg0, %c0_i32, %arg1 : i32, i32, i32
  }
  func.func @transform_1(%arg0: i32, %arg1: i32) -> (i32, i32) {
    %c0_i32 = arith.constant 0 : i32
    %c0_i32_0 = arith.constant 0 : i32
    %c0_i32_1 = arith.constant 0 : i32
    return %c0_i32, %c0_i32_0 : i32, i32
  }
  func.func @transform_2(%arg0: i32, %arg1: i32) -> (i32, i32) {
    %c0_i32 = arith.constant 0 : i32
    %c0_i32_0 = arith.constant 0 : i32
    %c0_i32_1 = arith.constant 0 : i32
    return %c0_i32, %c0_i32_0 : i32, i32
  }
  func.func @transform_3(%arg0: i32, %arg1: i32) -> (i32, i32) {
    %c0_i32 = arith.constant 0 : i32
    %c0_i32_0 = arith.constant 0 : i32
    %c0_i32_1 = arith.constant 0 : i32
    return %c0_i32, %c0_i32_0 : i32, i32
  }
  func.func @transform_4(%arg0: i32, %arg1: i32) -> (i32, i32) {
    %c0_i32 = arith.constant 0 : i32
    %c0_i32_0 = arith.constant 0 : i32
    %c0_i32_1 = arith.constant 0 : i32
    return %c0_i32, %c0_i32_0 : i32, i32
  }
  func.func @transform_5(%arg0: i32, %arg1: i32) -> (i32, i32) {
    %c0_i32 = arith.constant 0 : i32
    %c0_i32_0 = arith.constant 0 : i32
    %c0_i32_1 = arith.constant 0 : i32
    return %c0_i32, %c0_i32_0 : i32, i32
  }
  func.func @transform_6(%arg0: i32, %arg1: i32) -> (i32, i32) {
    %c0_i32 = arith.constant 0 : i32
    %c0_i32_0 = arith.constant 0 : i32
    %c0_i32_1 = arith.constant 0 : i32
    return %c0_i32, %c0_i32_0 : i32, i32
  }
  func.func @transform_7(%arg0: i32, %arg1: i32) -> (i32, i32, i32) {
    %c0_i32 = arith.constant 0 : i32
    %c0_i32_0 = arith.constant 0 : i32
    return %arg0, %c0_i32, %arg1 : i32, i32, i32
  }
  func.func @transform_8(%arg0: i32, %arg1: i32) -> (i32, i32, i32) {
    %c0_i32 = arith.constant 0 : i32
    %c0_i32_0 = arith.constant 0 : i32
    return %arg0, %c0_i32, %arg1 : i32, i32, i32
  }
  func.func @transform_9(%arg0: i32, %arg1: i32) -> (i32, i32, i32) {
    %c0_i32 = arith.constant 0 : i32
    %c0_i32_0 = arith.constant 0 : i32
    return %arg0, %c0_i32, %arg1 : i32, i32, i32
  }
}

</mosaic_0001>

<llo_original>
// kernel: tpu_custom_call.1
$region0: #{tpu_custom_call.1}
  #allocation0 [shape = 'u32[]', space=smem, size = 0x4, offset = 0x4, fixed_abs, tag = 'smem constant byte address 0x4 - core index']
  #allocation1 [shape = 'u32[72,128]{1,0:T(1,128)}', space=vmem, size = 0x9000, scoped, tag = 'internal scratch']
  %s0 = inlined_call_operand.hbm [shape: bf16[2,16,256], index: 0, kind: input, shape index: {}]
  %s1 = inlined_call_operand.vmem [shape: bf16[2,16], index: 1, kind: input, shape index: {}]
  %s2 = inlined_call_operand.vmem [shape: f32[2,1], index: 2, kind: input, shape index: {}]
  %s3 = inlined_call_operand.vmem [shape: bf16[2,16], index: 3, kind: input, shape index: {}]
  %s4 = inlined_call_operand.vmem [shape: f32[2,1], index: 4, kind: input, shape index: {}]
  %s5 = inlined_call_operand.vmem [shape: bf16[16,16], index: 5, kind: input, shape index: {}]
  %s6 = inlined_call_operand.vmem [shape: f32[16,1], index: 6, kind: input, shape index: {}]
  %s7 = inlined_call_operand.hbm [shape: bf16[2,2,256], index: 7, kind: output, shape index: {0}]
  %s8 = inlined_call_operand.hbm [shape: bf16[2,2,256], index: 8, kind: output, shape index: {1}]
  %s9 = inlined_call_operand.hbm [shape: bf16[2,16,256], index: 9, kind: output, shape index: {2}]
  %10 = xla_tuple %s7, %s8, %s9
  %s11 = sld [smem:[#allocation0]]
  $region81: #{tpu_custom_call.1} parent=0
    _
  %s13 = ssub.s32 1, %s11
  %s14 = scalar_select 0, %s13, %s11
  $region1: #{tpu_custom_call.1} parent=0
    #allocation2 [shape = 'u8[16384]{0}', space=vmem, size = 0x4000, scoped, tag = 'input window, operand 0']
    #allocation3 [shape = 's32[2]{0}', space=sflag, size = 0x8, scoped, tag = 'scoped memory for tpu_custom_call.1']
    #allocation4 [shape = 's32[2]{0}', space=sflag, size = 0x8, scoped, tag = 'scoped memory for tpu_custom_call.1']
    #allocation5 [shape = 'u8[2048]{0}', space=vmem, size = 0x800, scoped, tag = 'output window, operand 0']
    #allocation6 [shape = 'u8[2048]{0}', space=vmem, size = 0x800, scoped, tag = 'output window, operand 1']
    #allocation7 [shape = 's32[2]{0}', space=sflag, size = 0x8, scoped, tag = 'scoped memory for tpu_custom_call.1']
    #allocation8 [shape = 'u8[16384]{0}', space=vmem, size = 0x4000, scoped, tag = 'output window, operand 2']
    %15 = vsyncpa [#allocation3], 0
    %s16 = scalar_lea.sflag [#allocation3], 1
    %17 = vsyncpa %s16, 0
    %18 = vsyncpa [#allocation4], 0
    %s19 = scalar_lea.sflag [#allocation4], 1
    %20 = vsyncpa %s19, 0
    %21 = vsyncpa [#allocation7], 0
    %s22 = scalar_lea.sflag [#allocation7], 1
    %23 = vsyncpa %s22, 0
    loop: start=0, step=1, limit=4
    $region2: #{tpu_custom_call.1} parent=1 // loop_pre_header
      _
    $region3: #{tpu_custom_call.1} parent=1 // loop_header
      %s25 = sphi 0, %s29
      %p26 = scmp.ge.s32.totalorder %s25, 4
      %s32 = sphi 0, %s44
      %s33 = sphi 0, %s40
      %s34 = sphi 0, %s32
      %s35 = sphi 0, %s33
      %s36 = sphi 0, %s34
      %s37 = sphi 0, %s35
      %s49 = sphi 0, %s51
      %s52 = sphi 0, %s49
      %s53 = sphi 0, %s52
      %s69 = sphi 0, %s53
      %s73 = sphi 0, %s73
      %s75 = sphi 0, %s73
      %s76 = sphi 0, %s75
      %s90 = sphi 0, %s76
      %s94 = sphi 0, %s94
      %s96 = sphi 0, %s94
      %s97 = sphi 0, %s96
      %s111 = sphi 0, %s97
      %s115 = sphi 0, %s115
      %s117 = sphi 0, %s115
      %s118 = sphi 0, %s117
      %s132 = sphi 0, %s118
      %s136 = sphi 0, %s136
      %s138 = sphi 0, %s136
      %s139 = sphi 0, %s138
      %s153 = sphi 0, %s139
      %s157 = sphi 0, %s157
      %s159 = sphi 0, %s157
      %s160 = sphi 0, %s159
      %s174 = sphi 0, %s160
      %s178 = sphi 0, %s178
      %s180 = sphi 0, %s178
      %s181 = sphi 0, %s180
      %s195 = sphi 0, %s181
      %s203 = sphi 0, %s205
      %s206 = sphi 0, %s203
      %s207 = sphi 0, %s206
      %s223 = sphi 0, %s207
      %s231 = sphi 0, %s233
      %s234 = sphi 0, %s231
      %s235 = sphi 0, %s234
      %s251 = sphi 0, %s235
      %s259 = sphi 0, %s261
      %s262 = sphi 0, %s259
      %s263 = sphi 0, %s262
      %s279 = sphi 0, %s263
    $region4: #{tpu_custom_call.1} parent=1 // loop_header_branch
      %28 = sbr.rel (%p26) target = $region8
    $region5: #{tpu_custom_call.1} parent=1 // loop_body
      %s30 = ssub.s32 %s25, 1
      %s31 = ssub.s32 %s25, 2
      %s38 = sadd.s32 1, %s33
      %p39 = scmp.ge.s32.totalorder %s38, 1
      %s40 = scalar_select %p39, 0, %s38
      %s41 = sadd.s32 1, %s32
      %s42 = scalar_select %p39, %s41, %s32
      %p43 = scmp.ge.s32.totalorder %s42, 2
      %s44 = scalar_select %p43, 0, %s42
      %s45 = ssub.s32 %s32, %s44
      %s46 = ssub.s32 %s33, %s40
      %s47 = sor.u32 %s45, %s46
      %p48 = scmp.eq.s32.totalorder %s47, 0
      %s50 = sadd.s32 %s49, 1
      %s51 = scalar_select %p48, %s49, %s50
      %p54 = pneg %p48
      %p55 = scmp.eq.s32.totalorder %s25, 1
      %p56 = por %p54, %p55
      %p57 = scmp.ne.s32.totalorder %s49, %s52
      %p58 = scmp.eq.s32.totalorder %s25, 0
      %p59 = por %p57, %p58
      %p60 = scmp.ne.s32.totalorder %s49, %s52
      %p61 = scmp.eq.s32.totalorder %s30, 1
      %p62 = por %p60, %p61
      %p63 = scmp.ne.s32.totalorder %s52, %s53
      %p64 = scmp.eq.s32.totalorder %s30, 0
      %p65 = por %p63, %p64
      %p66 = scmp.ne.s32.totalorder %s52, %s53
      %p67 = scmp.eq.s32.totalorder %s31, 1
      %p68 = por %p66, %p67
      %p70 = scmp.ne.s32.totalorder %s53, %s69
      %p71 = scmp.eq.s32.totalorder %s31, 0
      %p72 = por %p70, %p71
      %s74 = sadd.s32 %s73, 1
      %p77 = scmp.eq.s32.totalorder %s25, 1
      %p78 = scmp.ne.s32.totalorder %s73, %s75
      %p79 = scmp.eq.s32.totalorder %s25, 0
      %p80 = por %p78, %p79
      %p81 = scmp.ne.s32.totalorder %s73, %s75
      %p82 = scmp.eq.s32.totalorder %s30, 1
      %p83 = por %p81, %p82
      %p84 = scmp.ne.s32.totalorder %s75, %s76
      %p85 = scmp.eq.s32.totalorder %s30, 0
      %p86 = por %p84, %p85
      %p87 = scmp.ne.s32.totalorder %s75, %s76
      %p88 = scmp.eq.s32.totalorder %s31, 1
      %p89 = por %p87, %p88
      %p91 = scmp.ne.s32.totalorder %s76, %s90
      %p92 = scmp.eq.s32.totalorder %s31, 0
      %p93 = por %p91, %p92
      %s95 = sadd.s32 %s94, 1
      %p98 = scmp.eq.s32.totalorder %s25, 1
      %p99 = scmp.ne.s32.totalorder %s94, %s96
      %p100 = scmp.eq.s32.totalorder %s25, 0
      %p101 = por %p99, %p100
      %p102 = scmp.ne.s32.totalorder %s94, %s96
      %p103 = scmp.eq.s32.totalorder %s30, 1
      %p104 = por %p102, %p103
      %p105 = scmp.ne.s32.totalorder %s96, %s97
      %p106 = scmp.eq.s32.totalorder %s30, 0
      %p107 = por %p105, %p106
      %p108 = scmp.ne.s32.totalorder %s96, %s97
      %p109 = scmp.eq.s32.totalorder %s31, 1
      %p110 = por %p108, %p109
      %p112 = scmp.ne.s32.totalorder %s97, %s111
      %p113 = scmp.eq.s32.totalorder %s31, 0
      %p114 = por %p112, %p113
      %s116 = sadd.s32 %s115, 1
      %p119 = scmp.eq.s32.totalorder %s25, 1
      %p120 = scmp.ne.s32.totalorder %s115, %s117
      %p121 = scmp.eq.s32.totalorder %s25, 0
      %p122 = por %p120, %p121
      %p123 = scmp.ne.s32.totalorder %s115, %s117
      %p124 = scmp.eq.s32.totalorder %s30, 1
      %p125 = por %p123, %p124
      %p126 = scmp.ne.s32.totalorder %s117, %s118
      %p127 = scmp.eq.s32.totalorder %s30, 0
      %p128 = por %p126, %p127
      %p129 = scmp.ne.s32.totalorder %s117, %s118
      %p130 = scmp.eq.s32.totalorder %s31, 1
      %p131 = por %p129, %p130
      %p133 = scmp.ne.s32.totalorder %s118, %s132
      %p134 = scmp.eq.s32.totalorder %s31, 0
      %p135 = por %p133, %p134
      %s137 = sadd.s32 %s136, 1
      %p140 = scmp.eq.s32.totalorder %s25, 1
      %p141 = scmp.ne.s32.totalorder %s136, %s138
      %p142 = scmp.eq.s32.totalorder %s25, 0
      %p143 = por %p141, %p142
      %p144 = scmp.ne.s32.totalorder %s136, %s138
      %p145 = scmp.eq.s32.totalorder %s30, 1
      %p146 = por %p144, %p145
      %p147 = scmp.ne.s32.totalorder %s138, %s139
      %p148 = scmp.eq.s32.totalorder %s30, 0
      %p149 = por %p147, %p148
      %p150 = scmp.ne.s32.totalorder %s138, %s139
      %p151 = scmp.eq.s32.totalorder %s31, 1
      %p152 = por %p150, %p151
      %p154 = scmp.ne.s32.totalorder %s139, %s153
      %p155 = scmp.eq.s32.totalorder %s31, 0
      %p156 = por %p154, %p155
      %s158 = sadd.s32 %s157, 1
      %p161 = scmp.eq.s32.totalorder %s25, 1
      %p162 = scmp.ne.s32.totalorder %s157, %s159
      %p163 = scmp.eq.s32.totalorder %s25, 0
      %p164 = por %p162, %p163
      %p165 = scmp.ne.s32.totalorder %s157, %s159
      %p166 = scmp.eq.s32.totalorder %s30, 1
      %p167 = por %p165, %p166
      %p168 = scmp.ne.s32.totalorder %s159, %s160
      %p169 = scmp.eq.s32.totalorder %s30, 0
      %p170 = por %p168, %p169
      %p171 = scmp.ne.s32.totalorder %s159, %s160
      %p172 = scmp.eq.s32.totalorder %s31, 1
      %p173 = por %p171, %p172
      %p175 = scmp.ne.s32.totalorder %s160, %s174
      %p176 = scmp.eq.s32.totalorder %s31, 0
      %p177 = por %p175, %p176
      %s179 = sadd.s32 %s178, 1
      %p182 = scmp.eq.s32.totalorder %s25, 1
      %p183 = scmp.ne.s32.totalorder %s178, %s180
      %p184 = scmp.eq.s32.totalorder %s25, 0
      %p185 = por %p183, %p184
      %p186 = scmp.ne.s32.totalorder %s178, %s180
      %p187 = scmp.eq.s32.totalorder %s30, 1
      %p188 = por %p186, %p187
      %p189 = scmp.ne.s32.totalorder %s180, %s181
      %p190 = scmp.eq.s32.totalorder %s30, 0
      %p191 = por %p189, %p190
      %p192 = scmp.ne.s32.totalorder %s180, %s181
      %p193 = scmp.eq.s32.totalorder %s31, 1
      %p194 = por %p192, %p193
      %p196 = scmp.ne.s32.totalorder %s181, %s195
      %p197 = scmp.eq.s32.totalorder %s31, 0
      %p198 = por %p196, %p197
      %s199 = ssub.s32 %s32, %s44
      %s200 = ssub.s32 %s33, %s40
      %s201 = sor.u32 %s199, %s200
      %p202 = scmp.eq.s32.totalorder %s201, 0
      %s204 = sadd.s32 %s203, 1
      %s205 = scalar_select %p202, %s203, %s204
      %p208 = pneg %p202
      %p209 = scmp.eq.s32.totalorder %s25, 1
      %p210 = por %p208, %p209
      %p211 = scmp.ne.s32.totalorder %s203, %s206
      %p212 = scmp.eq.s32.totalorder %s25, 0
      %p213 = por %p211, %p212
      %p214 = scmp.ne.s32.totalorder %s203, %s206
      %p215 = scmp.eq.s32.totalorder %s30, 1
      %p216 = por %p214, %p215
      %p217 = scmp.ne.s32.totalorder %s206, %s207
      %p218 = scmp.eq.s32.totalorder %s30, 0
      %p219 = por %p217, %p218
      %p220 = scmp.ne.s32.totalorder %s206, %s207
      %p221 = scmp.eq.s32.totalorder %s31, 1
      %p222 = por %p220, %p221
      %p224 = scmp.ne.s32.totalorder %s207, %s223
      %p225 = scmp.eq.s32.totalorder %s31, 0
      %p226 = por %p224, %p225
      %s227 = ssub.s32 %s32, %s44
      %s228 = ssub.s32 %s33, %s40
      %s229 = sor.u32 %s227, %s228
      %p230 = scmp.eq.s32.totalorder %s229, 0
      %s232 = sadd.s32 %s231, 1
      %s233 = scalar_select %p230, %s231, %s232
      %p236 = pneg %p230
      %p237 = scmp.eq.s32.totalorder %s25, 1
      %p238 = por %p236, %p237
      %p239 = scmp.ne.s32.totalorder %s231, %s234
      %p240 = scmp.eq.s32.totalorder %s25, 0
      %p241 = por %p239, %p240
      %p242 = scmp.ne.s32.totalorder %s231, %s234
      %p243 = scmp.eq.s32.totalorder %s30, 1
      %p244 = por %p242, %p243
      %p245 = scmp.ne.s32.totalorder %s234, %s235
      %p246 = scmp.eq.s32.totalorder %s30, 0
      %p247 = por %p245, %p246
      %p248 = scmp.ne.s32.totalorder %s234, %s235
      %p249 = scmp.eq.s32.totalorder %s31, 1
      %p250 = por %p248, %p249
      %p252 = scmp.ne.s32.totalorder %s235, %s251
      %p253 = scmp.eq.s32.totalorder %s31, 0
      %p254 = por %p252, %p253
      %s255 = ssub.s32 %s32, %s44
      %s256 = ssub.s32 %s33, %s40
      %s257 = sor.u32 %s255, %s256
      %p258 = scmp.eq.s32.totalorder %s257, 0
      %s260 = sadd.s32 %s259, 1
      %s261 = scalar_select %p258, %s259, %s260
      %p264 = pneg %p258
      %p265 = scmp.eq.s32.totalorder %s25, 1
      %p266 = por %p264, %p265
      %p267 = scmp.ne.s32.totalorder %s259, %s262
      %p268 = scmp.eq.s32.totalorder %s25, 0
      %p269 = por %p267, %p268
      %p270 = scmp.ne.s32.totalorder %s259, %s262
      %p271 = scmp.eq.s32.totalorder %s30, 1
      %p272 = por %p270, %p271
      %p273 = scmp.ne.s32.totalorder %s262, %s263
      %p274 = scmp.eq.s32.totalorder %s30, 0
      %p275 = por %p273, %p274
      %p276 = scmp.ne.s32.totalorder %s262, %s263
      %p277 = scmp.eq.s32.totalorder %s31, 1
      %p278 = por %p276, %p277
      %p280 = scmp.ne.s32.totalorder %s263, %s279
      %p281 = scmp.eq.s32.totalorder %s31, 0
      %p282 = por %p280, %p281
      %p283 = scmp.le.s32.totalorder 1, %s25
      %p284 = scmp.lt.s32.totalorder %s25, 3
      %p285 = pnand %p283, %p284
      %p286 = pneg %p285
      // Predicated region
      $region9: #{tpu_custom_call.1} parent=5 // pred_check
        _
      $region10: #{tpu_custom_call.1} parent=5 // pred_check_branch
        %288 = sbr.rel (%p285) target = $region12
      $region11: #{tpu_custom_call.1} parent=5 // pred_region
        %s289 = ssub.s32 %s25, 1
        // Predicated region
        $region13: #{tpu_custom_call.1} parent=11 // pred_check
          %p290 = pneg %p86
        $region14: #{tpu_custom_call.1} parent=11 // pred_check_branch
          %292 = sbr.rel (%p290) target = $region16
        $region15: #{tpu_custom_call.1} parent=11 // pred_region
          _
        $region16: #{tpu_custom_call.1} parent=11 // pred_fallthru
          _
        // Predicated region
        $region17: #{tpu_custom_call.1} parent=11 // pred_check
          %p293 = pneg %p107
        $region18: #{tpu_custom_call.1} parent=11 // pred_check_branch
          %295 = sbr.rel (%p293) target = $region20
        $region19: #{tpu_custom_call.1} parent=11 // pred_region
          _
        $region20: #{tpu_custom_call.1} parent=11 // pred_fallthru
          _
        // Predicated region
        $region21: #{tpu_custom_call.1} parent=11 // pred_check
          %p296 = pneg %p128
        $region22: #{tpu_custom_call.1} parent=11 // pred_check_branch
          %298 = sbr.rel (%p296) target = $region24
        $region23: #{tpu_custom_call.1} parent=11 // pred_region
          _
        $region24: #{tpu_custom_call.1} parent=11 // pred_fallthru
          _
        // Predicated region
        $region25: #{tpu_custom_call.1} parent=11 // pred_check
          %p299 = pneg %p149
        $region26: #{tpu_custom_call.1} parent=11 // pred_check_branch
          %301 = sbr.rel (%p299) target = $region28
        $region27: #{tpu_custom_call.1} parent=11 // pred_region
          _
        $region28: #{tpu_custom_call.1} parent=11 // pred_fallthru
          _
        // Predicated region
        $region29: #{tpu_custom_call.1} parent=11 // pred_check
          %p302 = pneg %p170
        $region30: #{tpu_custom_call.1} parent=11 // pred_check_branch
          %304 = sbr.rel (%p302) target = $region32
        $region31: #{tpu_custom_call.1} parent=11 // pred_region
          _
        $region32: #{tpu_custom_call.1} parent=11 // pred_fallthru
          _
        // Predicated region
        $region33: #{tpu_custom_call.1} parent=11 // pred_check
          %p305 = pneg %p191
        $region34: #{tpu_custom_call.1} parent=11 // pred_check_branch
          %307 = sbr.rel (%p305) target = $region36
        $region35: #{tpu_custom_call.1} parent=11 // pred_region
          _
        $region36: #{tpu_custom_call.1} parent=11 // pred_fallthru
          _
      $region12: #{tpu_custom_call.1} parent=5 // pred_fallthru
        _
      %p308 = scmp.lt.s32.totalorder %s25, 2
      // Predicated region
      $region37: #{tpu_custom_call.1} parent=5 // pred_check
        %p309 = pneg %p308
      $region38: #{tpu_custom_call.1} parent=5 // pred_check_branch
        %311 = sbr.rel (%p309) target = $region40
      $region39: #{tpu_custom_call.1} parent=5 // pred_region
        // Predicated region
        $region41: #{tpu_custom_call.1} parent=39 // pred_check
          %p312 = pneg %p59
        $region42: #{tpu_custom_call.1} parent=39 // pred_check_branch
          %314 = sbr.rel (%p312) target = $region44
        $region43: #{tpu_custom_call.1} parent=39 // pred_region
          %s315 = sand.u32 %s49, 1
          %s316 = scalar_lea.sflag [#allocation3], %s315
          %s317 = sand.u32 %s49, 1
          %s318 = smul.addr %s317, 16
          %s319 = scalar_lea.vmem [#allocation2], %s318
          %s320 = smul.u32 2, %s33
          %322 = vsyncadd %s316, 0
          %s323 = smul.addr %s32, 4
          %s324 = sadd.s32 %s320, %s323
          %s325 = smul.addr %s324, 4
          %s326 = scalar_lea.hbm %s0, %s325
          %s327 = sshll.u32 %s326, 4
          %s328 = int_to_ptr.hbm [resolvable:$true] %s327
          %s329 = sshll.u32 %s319, 4
          %s330 = int_to_ptr.vmem [resolvable:$true] %s329
          %335 = dma.hbm_to_vmem [thread:$0]  %s328, 256, %s330, %s316, 128, 128, 8
        $region44: #{tpu_custom_call.1} parent=39 // pred_fallthru
          _
      $region40: #{tpu_custom_call.1} parent=5 // pred_fallthru
        _
      %p336 = scmp.le.s32.totalorder 1, %s25
      %p337 = scmp.lt.s32.totalorder %s25, 3
      %p338 = pnand %p336, %p337
      %p339 = pneg %p338
      // Predicated region
      $region45: #{tpu_custom_call.1} parent=5 // pred_check
        _
      $region46: #{tpu_custom_call.1} parent=5 // pred_check_branch
        %341 = sbr.rel (%p338) target = $region48
      $region47: #{tpu_custom_call.1} parent=5 // pred_region
        %s342 = ssub.s32 %s25, 1
        %s343 = sand.u32 %s52, 1
        %s344 = scalar_lea.sflag [#allocation3], %s343
        %s345 = sand.u32 %s52, 1
        %s346 = smul.addr %s345, 16
        %s347 = scalar_lea.vmem [#allocation2], %s346
        // Predicated region
        $region49: #{tpu_custom_call.1} parent=47 // pred_check
          %p348 = pneg %p65
        $region50: #{tpu_custom_call.1} parent=47 // pred_check_branch
          %350 = sbr.rel (%p348) target = $region52
        $region51: #{tpu_custom_call.1} parent=47 // pred_region
          %352 = dma.done %s344, 256
        $region52: #{tpu_custom_call.1} parent=47 // pred_fallthru
          _
        %s353 = sand.u32 %s52, 1
        %s354 = scalar_lea.sflag [#allocation3], %s353
        %s355 = sand.u32 %s52, 1
        %s356 = smul.addr %s355, 16
        %s357 = scalar_lea.vmem [#allocation2], %s356
        %p358 = pneg %p65
        %p359 = pneg %p62
        %p360 = pneg %p86
        %p361 = pneg %p83
        %p362 = pneg %p107
        %p363 = pneg %p104
        %p364 = pneg %p128
        %p365 = pneg %p125
        %p366 = pneg %p149
        %p367 = pneg %p146
        %p368 = pneg %p170
        %p369 = pneg %p167
        %p370 = pneg %p191
        %p371 = pneg %p188
        %p372 = pneg %p219
        %p373 = pneg %p216
        %s374 = sand.u32 %s206, 1
        %s375 = scalar_lea.sflag [#allocation4], %s374
        %s376 = sand.u32 %s206, 1
        %s377 = smul.addr %s376, 2
        %s378 = scalar_lea.vmem [#allocation5], %s377
        %p379 = pneg %p247
        %p380 = pneg %p244
        %s381 = sand.u32 %s30, 1
        %s382 = scalar_lea.sflag [#allocation7], %s381
        %s383 = sand.u32 %s234, 1
        %s384 = smul.addr %s383, 2
        %s385 = scalar_lea.vmem [#allocation6], %s384
        %p386 = pneg %p275
        %p387 = pneg %p272
        %s388 = sand.u32 %s30, 1
        %s389 = scalar_lea.sflag [#allocation7], %s388
        %s390 = sand.u32 %s262, 1
        %s391 = smul.addr %s390, 16
        %s392 = scalar_lea.vmem [#allocation8], %s391
        %s393 = smul.u32 2, %s35
        %s394 = smul.u32 2, %s35
        %s395 = smul.u32 2, %s35
        %s396 = smul.u32 2, %s35
        %v398 = vld [vmem:[%s347] sm:$0xff]
        %v399 = vld [vmem:[%s347 + $0x8] sm:$0xff]
        %v400 = vld [vmem:[%s1] sm:$0x1]
        %v401 = vld [vmem:[%s2] sm:$0x3]
        %403 = vset.pattern.permute.xlu0 0
        %404 = vperm.xlu0 %403, %v401
        %v405 = vpop.permute.xlu0 %404
        %v409 = vunpack.c.l.b16 %v398
        %v410 = vunpack.c.h.b16 %v398
        %v411 = vunpack.c.l.b16 %v399
        %v412 = vunpack.c.h.b16 %v399
        %v413 = vpack.c.b16 %v411, %v409
        %v414 = vpack.c.b16 %v412, %v410
        %vm417 = vcmask 130048
        %v419 = vsel %vm417, %v400, 0
        %421 = vmatpush.bf16.msra.mxu0 0
        %422 = vmatpush.bf16.msra.mxu0 0
        %423 = vmatpush.bf16.msra.mxu0 0
        %424 = vmatpush.bf16.msra.mxu0 0
        %425 = vmatpush.bf16.msra.mxu0 0
        %426 = vmatpush.bf16.msra.mxu0 0
        %427 = vmatpush.bf16.msra.mxu0 0
        %428 = vmatpush.bf16.msra.mxu0 %v413
        %429 = vmatmul.bf16.gmra.mxu0 %v419
        %v430 = vpop.f32.mrf.mxu0
        %v431 = vadd.f32 %v405, %v430
        %v432 = vpop.f32.mrf.mxu0
        %433 = vdwg.mxu0
        %434 = vmatpush.bf16.msra.mxu0 0
        %435 = vmatpush.bf16.msra.mxu0 0
        %436 = vmatpush.bf16.msra.mxu0 0
        %437 = vmatpush.bf16.msra.mxu0 0
        %438 = vmatpush.bf16.msra.mxu0 0
        %439 = vmatpush.bf16.msra.mxu0 0
        %440 = vmatpush.bf16.msra.mxu0 0
        %441 = vmatpush.bf16.msra.mxu0 %v414
        %442 = vmatmul.bf16.gmra.mxu0 %v419
        %v443 = vpop.f32.mrf.mxu0
        %v444 = vadd.f32 %v405, %v443
        %v445 = vpop.f32.mrf.mxu0
        %446 = vdwg.mxu0
        %v447 = vld [vmem:[%s3] sm:$0x1]
        %v448 = vld [vmem:[%s4] sm:$0x3]
        %450 = vset.pattern.permute.xlu0 0
        %451 = vperm.xlu0 %450, %v448
        %v452 = vpop.permute.xlu0 %451
        %v455 = vsel %vm417, %v447, 0
        %457 = vmatpush.bf16.msra.mxu0 0
        %458 = vmatpush.bf16.msra.mxu0 0
        %459 = vmatpush.bf16.msra.mxu0 0
        %460 = vmatpush.bf16.msra.mxu0 0
        %461 = vmatpush.bf16.msra.mxu0 0
        %462 = vmatpush.bf16.msra.mxu0 0
        %463 = vmatpush.bf16.msra.mxu0 0
        %464 = vmatpush.bf16.msra.mxu0 %v413
        %465 = vmatmul.bf16.gmra.mxu0 %v455
        %v466 = vpop.f32.mrf.mxu0
        %v467 = vadd.f32 %v452, %v466
        %v468 = vpop.f32.mrf.mxu0
        %469 = vdwg.mxu0
        %470 = vmatpush.bf16.msra.mxu0 0
        %471 = vmatpush.bf16.msra.mxu0 0
        %472 = vmatpush.bf16.msra.mxu0 0
        %473 = vmatpush.bf16.msra.mxu0 0
        %474 = vmatpush.bf16.msra.mxu0 0
        %475 = vmatpush.bf16.msra.mxu0 0
        %476 = vmatpush.bf16.msra.mxu0 0
        %477 = vmatpush.bf16.msra.mxu0 %v414
        %478 = vmatmul.bf16.gmra.mxu0 %v455
        %v479 = vpop.f32.mrf.mxu0
        %v480 = vadd.f32 %v452, %v479
        %v481 = vpop.f32.mrf.mxu0
        %482 = vdwg.mxu0
        %v483 = vld [vmem:[%s5] sm:$0xf]
        %v484 = vld [vmem:[%s5 + $0x4] sm:$0xf]
        %v485 = vld [vmem:[%s6] sm:$0xff]
        %v486 = vld [vmem:[%s6 + $0x8] sm:$0xff]
        %488 = vset.pattern.permute.xlu0 0
        %489 = vperm.xlu0 %488, %v485
        %v490 = vpop.permute.xlu0 %489
        %493 = vset.pattern.permute.xlu0 0
        %494 = vperm.xlu0 %493, %v486
        %v495 = vpop.permute.xlu0 %494
        %v499 = vunpack.c.l.b16 %v483
        %v500 = vunpack.c.l.b16 %v484
        %v501 = vpack.c.b16 %v500, %v499
        %v503 = vsel %vm417, %v501, 0
        %505 = vmatpush.bf16.msra.mxu0 0
        %506 = vmatpush.bf16.msra.mxu0 0
        %507 = vmatpush.bf16.msra.mxu0 0
        %508 = vmatpush.bf16.msra.mxu0 0
        %509 = vmatpush.bf16.msra.mxu0 0
        %510 = vmatpush.bf16.msra.mxu0 0
        %511 = vmatpush.bf16.msra.mxu0 0
        %512 = vmatpush.bf16.msra.mxu0 %v413
        %513 = vmatmul.bf16.gmra.mxu0 %v503
        %v514 = vpop.f32.mrf.mxu0
        %v515 = vadd.f32 %v490, %v514
        %v516 = vpop.f32.mrf.mxu0
        %v517 = vadd.f32 %v495, %v516
        %518 = vdwg.mxu0
        %519 = vmatpush.bf16.msra.mxu0 0
        %520 = vmatpush.bf16.msra.mxu0 0
        %521 = vmatpush.bf16.msra.mxu0 0
        %522 = vmatpush.bf16.msra.mxu0 0
        %523 = vmatpush.bf16.msra.mxu0 0
        %524 = vmatpush.bf16.msra.mxu0 0
        %525 = vmatpush.bf16.msra.mxu0 0
        %526 = vmatpush.bf16.msra.mxu0 %v414
        %527 = vmatmul.bf16.gmra.mxu0 %v503
        %v528 = vpop.f32.mrf.mxu0
        %v529 = vadd.f32 %v490, %v528
        %v530 = vpop.f32.mrf.mxu0
        %v531 = vadd.f32 %v495, %v530
        %532 = vdwg.mxu0
        %v533 = vpack.c.bf16 %v444, %v431
        %v535 = vrot.slane %v533, 3
        %vm536 = vcmask 1040384
        %v539 = vsel %vm536, %v533, %v535
        %541 = vst [vmem:[%s378] sm:$0x3] %v539
        %v542 = vpack.c.bf16 %v480, %v467
        %v544 = vrot.slane %v542, 3
        %v547 = vsel %vm536, %v542, %v544
        %549 = vst [vmem:[%s385] sm:$0x3] %v547
        %v550 = vpack.c.bf16 %v529, %v515
        %v551 = vpack.c.bf16 %v531, %v517
        %552 = vst [vmem:[%s392] sm:$0xff] %v550
        %553 = vst [vmem:[%s392 + $0x8] sm:$0xff] %v551
        %s554 = sand.u32 %s206, 1
        %s555 = scalar_lea.sflag [#allocation4], %s554
        %s556 = sand.u32 %s206, 1
        %s557 = smul.addr %s556, 2
        %s558 = scalar_lea.vmem [#allocation5], %s557
        %s559 = sand.u32 %s30, 1
        %s560 = scalar_lea.sflag [#allocation7], %s559
        %s561 = sand.u32 %s234, 1
        %s562 = smul.addr %s561, 2
        %s563 = scalar_lea.vmem [#allocation6], %s562
        %s564 = sand.u32 %s30, 1
        %s565 = scalar_lea.sflag [#allocation7], %s564
        %s566 = sand.u32 %s262, 1
        %s567 = smul.addr %s566, 16
        %s568 = scalar_lea.vmem [#allocation8], %s567
        // Predicated region
        $region53: #{tpu_custom_call.1} parent=47 // pred_check
          %p569 = pneg %p216
        $region54: #{tpu_custom_call.1} parent=47 // pred_check_branch
          %571 = sbr.rel (%p569) target = $region56
        $region55: #{tpu_custom_call.1} parent=47 // pred_region
          %s572 = smul.u32 2, %s35
          %574 = vsyncadd %s555, 0
          %s575 = smul.addr %s34, 2
          %s576 = sadd.s32 %s572, %s575
          %s577 = scalar_lea.hbm %s7, %s576
          %s579 = sshll.u32 %s558, 4
          %s580 = int_to_ptr.vmem [resolvable:$true] %s579
          %s581 = sshll.u32 %s577, 4
          %s582 = int_to_ptr.hbm [resolvable:$true] %s581
          %584 = dma.vmem_to_hbm [thread:$0]  %s580, 32, %s582, %s555
        $region56: #{tpu_custom_call.1} parent=47 // pred_fallthru
          _
        // Predicated region
        $region57: #{tpu_custom_call.1} parent=47 // pred_check
          %p585 = pneg %p244
        $region58: #{tpu_custom_call.1} parent=47 // pred_check_branch
          %587 = sbr.rel (%p585) target = $region60
        $region59: #{tpu_custom_call.1} parent=47 // pred_region
          %s588 = smul.u32 2, %s35
          %590 = vsyncadd %s560, 0
          %s591 = smul.addr %s34, 2
          %s592 = sadd.s32 %s588, %s591
          %s593 = scalar_lea.hbm %s8, %s592
          %s595 = sshll.u32 %s563, 4
          %s596 = int_to_ptr.vmem [resolvable:$true] %s595
          %s597 = sshll.u32 %s593, 4
          %s598 = int_to_ptr.hbm [resolvable:$true] %s597
          %600 = dma.vmem_to_hbm [thread:$0]  %s596, 32, %s598, %s560
        $region60: #{tpu_custom_call.1} parent=47 // pred_fallthru
          _
        // Predicated region
        $region61: #{tpu_custom_call.1} parent=47 // pred_check
          %p601 = pneg %p272
        $region62: #{tpu_custom_call.1} parent=47 // pred_check_branch
          %603 = sbr.rel (%p601) target = $region64
        $region63: #{tpu_custom_call.1} parent=47 // pred_region
          %s604 = smul.u32 2, %s35
          %606 = vsyncadd %s565, 0
          %s607 = smul.addr %s34, 4
          %s608 = sadd.s32 %s604, %s607
          %s609 = smul.addr %s608, 4
          %s610 = scalar_lea.hbm %s9, %s609
          %s611 = sshll.u32 %s568, 4
          %s612 = int_to_ptr.vmem [resolvable:$true] %s611
          %s613 = sshll.u32 %s610, 4
          %s614 = int_to_ptr.hbm [resolvable:$true] %s613
          %619 = dma.vmem_to_hbm [thread:$0]  %s612, 256, %s614, %s565, 128, 128, 8
        $region64: #{tpu_custom_call.1} parent=47 // pred_fallthru
          _
      $region48: #{tpu_custom_call.1} parent=5 // pred_fallthru
        _
      %p620 = scmp.le.s32.totalorder 2, %s25
      // Predicated region
      $region65: #{tpu_custom_call.1} parent=5 // pred_check
        %p621 = pneg %p620
      $region66: #{tpu_custom_call.1} parent=5 // pred_check_branch
        %623 = sbr.rel (%p621) target = $region68
      $region67: #{tpu_custom_call.1} parent=5 // pred_region
        %s624 = ssub.s32 %s25, 2
        // Predicated region
        $region69: #{tpu_custom_call.1} parent=67 // pred_check
          %p625 = pneg %p222
        $region70: #{tpu_custom_call.1} parent=67 // pred_check_branch
          %627 = sbr.rel (%p625) target = $region72
        $region71: #{tpu_custom_call.1} parent=67 // pred_region
          %s628 = sand.u32 %s207, 1
          %s629 = scalar_lea.sflag [#allocation4], %s628
          %s630 = sand.u32 %s207, 1
          %s631 = smul.addr %s630, 2
          %s632 = scalar_lea.vmem [#allocation5], %s631
          %634 = dma.done %s629, 32
        $region72: #{tpu_custom_call.1} parent=67 // pred_fallthru
          _
        // Predicated region
        $region73: #{tpu_custom_call.1} parent=67 // pred_check
          %p635 = pneg %p250
        $region74: #{tpu_custom_call.1} parent=67 // pred_check_branch
          %637 = sbr.rel (%p635) target = $region76
        $region75: #{tpu_custom_call.1} parent=67 // pred_region
          %s638 = sand.u32 %s31, 1
          %s639 = scalar_lea.sflag [#allocation7], %s638
          %s640 = sand.u32 %s235, 1
          %s641 = smul.addr %s640, 2
          %s642 = scalar_lea.vmem [#allocation6], %s641
          %644 = dma.done %s639, 32
        $region76: #{tpu_custom_call.1} parent=67 // pred_fallthru
          _
        // Predicated region
        $region77: #{tpu_custom_call.1} parent=67 // pred_check
          %p645 = pneg %p278
        $region78: #{tpu_custom_call.1} parent=67 // pred_check_branch
          %647 = sbr.rel (%p645) target = $region80
        $region79: #{tpu_custom_call.1} parent=67 // pred_region
          %s648 = sand.u32 %s31, 1
          %s649 = scalar_lea.sflag [#allocation7], %s648
          %s650 = sand.u32 %s263, 1
          %s651 = smul.addr %s650, 16
          %s652 = scalar_lea.vmem [#allocation8], %s651
          %654 = dma.done %s649, 256
        $region80: #{tpu_custom_call.1} parent=67 // pred_fallthru
          _
      $region68: #{tpu_custom_call.1} parent=5 // pred_fallthru
        _
    $region6: #{tpu_custom_call.1} parent=1 // loop_footer
      %s29 = sadd.s32 1, %s25
    $region7: #{tpu_custom_call.1} parent=1 // loop_footer_branch
      %24 = sbr.rel target = $region3
    $region8: #{tpu_custom_call.1} parent=1 // loop_exit
      _
    %655 = vsyncpa [#allocation3], 1
    %s656 = scalar_lea.sflag [#allocation3], 1
    %657 = vsyncpa %s656, 1
    %658 = vsyncpa [#allocation4], 1
    %s659 = scalar_lea.sflag [#allocation4], 1
    %660 = vsyncpa %s659, 1
    %661 = vsyncpa [#allocation7], 1
    %s662 = scalar_lea.sflag [#allocation7], 1
    %663 = vsyncpa %s662, 1

</llo_original>
